<compile_context>
chip_gen: v7x
topology: tpu7x:2x2x1
jax: 0.10.0
libtpu: 0.0.40
codegen_flags: <defaults>
</compile_context>

<pallas_src>
import functools

import jax
import jax.numpy as jnp
from jax import lax
from jax.experimental import pallas as pl
from jax.experimental.pallas import tpu as pltpu

EPS = 1e-5  # nn.InstanceNorm2d default


def basic_block_kernel(x_ref, tapmask_ref,
                       w1_ref, g1_ref, b1_ref,
                       w2_ref, g2_ref, b2_ref,
                       sw1_ref, sb1_ref, sw2_ref, sb2_ref,
                       out_ref, *, H, W, nb):
    """Processes `nb` batch elements per grid step on the unpadded H*W plane.

    x_ref       : (nb, C, P) f32   NCHW pixels flattened over (H, W), P = H*W
    tapmask_ref : (9, P)     f32   per-tap validity mask (1 inside the image,
                                   0 where the 3x3 tap would read out of bounds)
    w*_ref      : (C, 9*C)   bf16  conv weights, tap-major / Cin-minor (im2col)
    g*, b*      : (C, 1)     f32   InstanceNorm affine params
    sw1/sb1     : (Csq, C) / (Csq, 1) f32  SE squeeze 1x1 conv
    sw2/sb2     : (C, Csq) / (C, 1)   f32  SE excite 1x1 conv
    out_ref     : (nb, C, P) f32
    """
    C = x_ref.shape[1]
    P = H * W
    inv_hw = 1.0 / P

    # Flat (row-major) lane offset of each 3x3 tap; tap order t = dy*3 + dx.
    offs = tuple((dy - 1) * W + (dx - 1) for dy in range(3) for dx in range(3))

    # Hoisted loads: resident params reused across both convs and all nb images.
    w1 = w1_ref[...]
    w2 = w2_ref[...]
    g1 = g1_ref[...]; b1 = b1_ref[...]
    g2 = g2_ref[...]; b2 = b2_ref[...]
    sw1 = sw1_ref[...]; sb1 = sb1_ref[...]
    sw2 = sw2_ref[...]; sb2 = sb2_ref[...]
    masks = [tapmask_ref[t:t + 1, :] for t in range(9)]          # (1, P) each

    def conv3x3(a, w):
        # Each tap is a lane roll (XLU) of the resident f32 plane, masked so the
        # wrap-around / cross-row lanes contribute zero (== the zero padding of
        # a SAME 3x3 conv).  The 9 taps form a (9C, P) im2col slab that is cast
        # to bf16 once and hit with a single K=9C MXU matmul, f32 accumulation.
        taps = []
        for t, off in enumerate(offs):
            if off == 0:
                taps.append(a)                                   # centre tap
            else:
                rolled = pltpu.roll(a, shift=(-off) % P, axis=1)
                taps.append(rolled * masks[t])
        slab = jnp.concatenate(taps, axis=0).astype(jnp.bfloat16)    # (9C, P)
        return jnp.dot(w, slab, preferred_element_type=jnp.float32)  # (C, P) f32

    def instance_norm(a, g, b):
        # Two-pass mean / var (robust; avoids E[x^2] - mean^2 cancellation).
        mean = jnp.sum(a, axis=1, keepdims=True) * inv_hw            # (C, 1)
        d = a - mean
        var = jnp.sum(d * d, axis=1, keepdims=True) * inv_hw
        return d * lax.rsqrt(var + EPS) * g + b

    for i in range(nb):                      # static unroll over packed images
        x = x_ref[i]                                                 # (C, P) f32
        y1 = jnp.maximum(instance_norm(conv3x3(x, w1), g1, b1), 0.0)
        z = instance_norm(conv3x3(y1, w2), g2, b2)

        # SqueezeExcitation (tiny; stays in f32).
        pooled = jnp.sum(z, axis=1, keepdims=True) * inv_hw          # (C, 1)
        s = jnp.maximum(
            jnp.dot(sw1, pooled, preferred_element_type=jnp.float32) + sb1, 0.0)
        gate = jax.nn.sigmoid(
            jnp.dot(sw2, s, preferred_element_type=jnp.float32) + sb2)

        # Residual add + ReLU; the identity is the resident unpadded input plane.
        out_ref[i] = jnp.maximum(z * gate + x, 0.0)


def _pick_nb(n):
    """Images per grid step: amortize the ~0.35us per-step overhead while keeping
    >= 2 grid steps so both v7x TensorCores get work (batch axis is "parallel")."""
    for cand in (8, 4, 2):
        if n % cand == 0 and n // cand >= 2:
            return cand
    return 1


@jax.jit
def basic_block_forward(x_nchw, params):
    """Runs the Pallas kernel.  Input / output are NCHW like PyTorch."""
    (w1, g1, b1, w2, g2, b2, sw1, sb1, sw2, sb2) = params   # conv weights in HWIO
    N, C, H, W = x_nchw.shape
    P = H * W
    Csq = sw1.shape[0]
    nb = _pick_nb(N)

    # HWIO (3,3,Cin,Cout) -> (Cout, 9*Cin) bf16 im2col weight layout
    # (tap-major, Cin-minor); accumulation stays f32 inside the kernel.
    wk1 = jnp.transpose(w1, (3, 0, 1, 2)).reshape(C, 9 * C).astype(jnp.bfloat16)
    wk2 = jnp.transpose(w2, (3, 0, 1, 2)).reshape(C, 9 * C).astype(jnp.bfloat16)

    # Per-tap validity masks on the flat plane: tap t=dy*3+dx is valid at output
    # pixel (y, x) iff (y+dy-1, x+dx-1) lies inside the image.  Tiny, constant
    # block index -> DMA'd once and resident for the whole grid.
    ys = jnp.arange(H)[:, None]
    xs = jnp.arange(W)[None, :]
    mask_rows = []
    for dy in range(3):
        for dx in range(3):
            ok = ((ys + dy - 1 >= 0) & (ys + dy - 1 < H) &
                  (xs + dx - 1 >= 0) & (xs + dx - 1 < W))
            mask_rows.append(ok.reshape(P))
    tap_masks = jnp.stack(mask_rows, axis=0).astype(jnp.float32)      # (9, P)

    x_flat = x_nchw.reshape(N, C, P)                                  # free reshape

    kernel = functools.partial(basic_block_kernel, H=H, W=W, nb=nb)

    # VMEM budget: double-buffered in/out blocks + resident params + live
    # temporaries (taps, slab, z, ...), clamped to half the physical VMEM so the
    # same code stays safe on v7x (64 MiB) as well as v5e/v6e (128 MiB).
    est = (4 * nb * C * P * 4                 # in + out blocks, double-buffered
           + 2 * 9 * C * C * 2                # bf16 conv weights
           + (9 * P + 4 * C + 2 * Csq * C + Csq + C) * 4
           + 64 * C * P * 4                   # live temporaries headroom
           + (1 << 20))
    try:
        vmem_cap = int(pltpu.get_tpu_info().vmem_capacity_bytes)
    except Exception:
        vmem_cap = 64 << 20                   # conservative (v7x per-core VMEM)
    vmem_limit = int(min(max(est, 4 << 20), vmem_cap // 2))

    out_flat = pl.pallas_call(
        kernel,
        out_shape=jax.ShapeDtypeStruct((N, C, P), jnp.float32),
        grid_spec=pltpu.PrefetchScalarGridSpec(
            num_scalar_prefetch=0,
            grid=(N // nb,),
            in_specs=[
                pl.BlockSpec((nb, C, P), lambda n: (n, 0, 0)),
                pl.BlockSpec((9, P), lambda n: (0, 0)),
                pl.BlockSpec((C, 9 * C), lambda n: (0, 0)),
                pl.BlockSpec((C, 1), lambda n: (0, 0)),
                pl.BlockSpec((C, 1), lambda n: (0, 0)),
                pl.BlockSpec((C, 9 * C), lambda n: (0, 0)),
                pl.BlockSpec((C, 1), lambda n: (0, 0)),
                pl.BlockSpec((C, 1), lambda n: (0, 0)),
                pl.BlockSpec((Csq, C), lambda n: (0, 0)),
                pl.BlockSpec((Csq, 1), lambda n: (0, 0)),
                pl.BlockSpec((C, Csq), lambda n: (0, 0)),
                pl.BlockSpec((C, 1), lambda n: (0, 0)),
            ],
            out_specs=pl.BlockSpec((nb, C, P), lambda n: (n, 0, 0)),
        ),
        compiler_params=pltpu.CompilerParams(
            dimension_semantics=("parallel",),   # batch items independent
            vmem_limit_bytes=vmem_limit),
    )(x_flat, tap_masks, wk1, g1, b1, wk2, g2, b2, sw1, sb1, sw2, sb2)

    return out_flat.reshape(N, C, H, W)          # free reshape, no crop needed


def reference_forward(x_nchw, params, conv_dtype=jnp.float32):
    """Pure-JAX (XLA) reference.  conv_dtype=bfloat16 mimics the kernel's MXU
    input rounding (accumulation stays f32 in both)."""
    (w1, g1, b1, w2, g2, b2, sw1, sb1, sw2, sb2) = params
    x = jnp.transpose(x_nchw, (0, 2, 3, 1))                   # NHWC
    N, H, W, C = x.shape

    def cast(a):
        return a.astype(conv_dtype).astype(jnp.float32)

    def conv(a, w):
        return lax.conv_general_dilated(cast(a), cast(w), (1, 1), 'SAME',
                                        dimension_numbers=('NHWC', 'HWIO', 'NHWC'))

    def inorm(a, g, b):
        m = a.mean(axis=(1, 2), keepdims=True)
        v = ((a - m) ** 2).mean(axis=(1, 2), keepdims=True)
        return (a - m) / jnp.sqrt(v + EPS) * g[:, 0].reshape(1, 1, 1, C) \
            + b[:, 0].reshape(1, 1, 1, C)

    y = jax.nn.relu(inorm(conv(x, w1), g1, b1))
    z = inorm(conv(y, w2), g2, b2)
    pooled = z.mean(axis=(1, 2))                              # (N, C)
    s = jax.nn.relu(pooled @ sw1.T + sb1[:, 0])               # (N, Csq)
    gate = jax.nn.sigmoid(s @ sw2.T + sb2[:, 0])              # (N, C)
    z = z * gate[:, None, None, :]
    out = jax.nn.relu(z + x)
    return jnp.transpose(out, (0, 3, 1, 2))


def make_params(key, channels, ratio=1.0 / 16):
    squeezed = max(1, int(channels * ratio))
    ks = jax.random.split(key, 10)
    scale = 0.3
    w1 = scale * jax.random.normal(ks[0], (3, 3, channels, channels), jnp.float32)  # HWIO
    g1 = 1.0 + 0.1 * jax.random.normal(ks[1], (channels, 1), jnp.float32)
    b1 = 0.1 * jax.random.normal(ks[2], (channels, 1), jnp.float32)
    w2 = scale * jax.random.normal(ks[3], (3, 3, channels, channels), jnp.float32)
    g2 = 1.0 + 0.1 * jax.random.normal(ks[4], (channels, 1), jnp.float32)
    b2 = 0.1 * jax.random.normal(ks[5], (channels, 1), jnp.float32)
    sw1 = scale * jax.random.normal(ks[6], (squeezed, channels), jnp.float32)
    sb1 = 0.1 * jax.random.normal(ks[7], (squeezed, 1), jnp.float32)
    sw2 = scale * jax.random.normal(ks[8], (channels, squeezed), jnp.float32)
    sb2 = 0.1 * jax.random.normal(ks[9], (channels, 1), jnp.float32)
    return (w1, g1, b1, w2, g2, b2, sw1, sb1, sw2, sb2)


if __name__ == "__main__":
    key = jax.random.PRNGKey(0)
    k_x, k_p = jax.random.split(key)

    N, C, H, W = 2, 4, 16, 16
    x = jax.random.normal(k_x, (N, C, H, W), jnp.float32)     # NCHW like PyTorch
    params = make_params(k_p, C)

    out = jax.block_until_ready(basic_block_forward(x, params))
    assert out.shape == (N, C, H, W)

    # Tight algorithmic check: reference with the same bf16 rounding of conv
    # operands that the kernel's MXU path uses; only summation-order / tiny
    # transcendental differences remain.
    ref_bf16 = jax.block_until_ready(reference_forward(x, params, jnp.bfloat16))
    err_algo = float(jnp.max(jnp.abs(out - ref_bf16)))
    assert err_algo < 2e-2, f"mismatch vs bf16-input reference: {err_algo}"

    # Loose sanity check vs pure-f32 module semantics; bound accounts for the
    # bf16-rounded conv operands propagated through two convs + instance norms.
    ref_f32 = jax.block_until_ready(reference_forward(x, params))
    err_f32 = float(jnp.max(jnp.abs(out - ref_f32)))
    assert err_f32 < 1e-1, f"mismatch vs f32 reference: {err_f32}"

    print("KERNEL_OK")
</pallas_src>

<mosaic_0001>
module attributes {stable_mosaic.version = 11 : i64} {
  func.func @basic_block_kernel(%arg0: i32, %arg1: memref<1x4x256xf32, #tpu.memory_space<vmem>>, %arg2: memref<9x256xf32, #tpu.memory_space<vmem>>, %arg3: memref<4x36xbf16, #tpu.memory_space<vmem>>, %arg4: memref<4x1xf32, #tpu.memory_space<vmem>>, %arg5: memref<4x1xf32, #tpu.memory_space<vmem>>, %arg6: memref<4x36xbf16, #tpu.memory_space<vmem>>, %arg7: memref<4x1xf32, #tpu.memory_space<vmem>>, %arg8: memref<4x1xf32, #tpu.memory_space<vmem>>, %arg9: memref<1x4xf32, #tpu.memory_space<vmem>>, %arg10: memref<1x1xf32, #tpu.memory_space<vmem>>, %arg11: memref<4x1xf32, #tpu.memory_space<vmem>>, %arg12: memref<4x1xf32, #tpu.memory_space<vmem>>, %arg13: memref<1x4x256xf32, #tpu.memory_space<vmem>>) attributes {dimension_semantics = [#tpu.dimension_semantics<parallel>], iteration_bounds = array<i64: 2>, scalar_prefetch = 0 : i64, scratch_operands = 0 : i64, tpu.core_type = #tpu.core_type<tc>, window_params = [{transform_indices = @transform_0, window_bounds = array<i64: 1, 4, 256>}, {pipeline_mode = #tpu.pipeline_mode<synchronous>, transform_indices = @transform_1, window_bounds = array<i64: 9, 256>}, {pipeline_mode = #tpu.pipeline_mode<synchronous>, transform_indices = @transform_2, window_bounds = array<i64: 4, 36>}, {pipeline_mode = #tpu.pipeline_mode<synchronous>, transform_indices = @transform_3, window_bounds = array<i64: 4, 1>}, {pipeline_mode = #tpu.pipeline_mode<synchronous>, transform_indices = @transform_4, window_bounds = array<i64: 4, 1>}, {pipeline_mode = #tpu.pipeline_mode<synchronous>, transform_indices = @transform_5, window_bounds = array<i64: 4, 36>}, {pipeline_mode = #tpu.pipeline_mode<synchronous>, transform_indices = @transform_6, window_bounds = array<i64: 4, 1>}, {pipeline_mode = #tpu.pipeline_mode<synchronous>, transform_indices = @transform_7, window_bounds = array<i64: 4, 1>}, {pipeline_mode = #tpu.pipeline_mode<synchronous>, transform_indices = @transform_8, window_bounds = array<i64: 1, 4>}, {pipeline_mode = #tpu.pipeline_mode<synchronous>, transform_indices = @transform_9, window_bounds = array<i64: 1, 1>}, {pipeline_mode = #tpu.pipeline_mode<synchronous>, transform_indices = @transform_10, window_bounds = array<i64: 4, 1>}, {pipeline_mode = #tpu.pipeline_mode<synchronous>, transform_indices = @transform_11, window_bounds = array<i64: 4, 1>}, {transform_indices = @transform_12, window_bounds = array<i64: 1, 4, 256>}]} {
    %c0 = arith.constant 0 : index
    %c0_0 = arith.constant 0 : index
    %0 = vector.load %arg3[%c0, %c0_0] : memref<4x36xbf16, #tpu.memory_space<vmem>>, vector<4x36xbf16>
    %c0_1 = arith.constant 0 : index
    %c0_2 = arith.constant 0 : index
    %1 = vector.load %arg6[%c0_1, %c0_2] : memref<4x36xbf16, #tpu.memory_space<vmem>>, vector<4x36xbf16>
    %c0_3 = arith.constant 0 : index
    %c0_4 = arith.constant 0 : index
    %2 = vector.load %arg4[%c0_3, %c0_4] : memref<4x1xf32, #tpu.memory_space<vmem>>, vector<4x1xf32>
    %c0_5 = arith.constant 0 : index
    %c0_6 = arith.constant 0 : index
    %3 = vector.load %arg5[%c0_5, %c0_6] : memref<4x1xf32, #tpu.memory_space<vmem>>, vector<4x1xf32>
    %c0_7 = arith.constant 0 : index
    %c0_8 = arith.constant 0 : index
    %4 = vector.load %arg7[%c0_7, %c0_8] : memref<4x1xf32, #tpu.memory_space<vmem>>, vector<4x1xf32>
    %c0_9 = arith.constant 0 : index
    %c0_10 = arith.constant 0 : index
    %5 = vector.load %arg8[%c0_9, %c0_10] : memref<4x1xf32, #tpu.memory_space<vmem>>, vector<4x1xf32>
    %c0_11 = arith.constant 0 : index
    %c0_12 = arith.constant 0 : index
    %6 = vector.load %arg9[%c0_11, %c0_12] : memref<1x4xf32, #tpu.memory_space<vmem>>, vector<1x4xf32>
    %c0_13 = arith.constant 0 : index
    %c0_14 = arith.constant 0 : index
    %7 = vector.load %arg10[%c0_13, %c0_14] : memref<1x1xf32, #tpu.memory_space<vmem>>, vector<1x1xf32>
    %c0_15 = arith.constant 0 : index
    %c0_16 = arith.constant 0 : index
    %8 = vector.load %arg11[%c0_15, %c0_16] : memref<4x1xf32, #tpu.memory_space<vmem>>, vector<4x1xf32>
    %c0_17 = arith.constant 0 : index
    %c0_18 = arith.constant 0 : index
    %9 = vector.load %arg12[%c0_17, %c0_18] : memref<4x1xf32, #tpu.memory_space<vmem>>, vector<4x1xf32>
    %c0_19 = arith.constant 0 : index
    %c0_20 = arith.constant 0 : index
    %10 = vector.load %arg2[%c0_19, %c0_20] : memref<9x256xf32, #tpu.memory_space<vmem>>, vector<1x256xf32>
    %c1 = arith.constant 1 : index
    %c0_21 = arith.constant 0 : index
    %11 = vector.load %arg2[%c1, %c0_21] : memref<9x256xf32, #tpu.memory_space<vmem>>, vector<1x256xf32>
    %c2 = arith.constant 2 : index
    %c0_22 = arith.constant 0 : index
    %12 = vector.load %arg2[%c2, %c0_22] : memref<9x256xf32, #tpu.memory_space<vmem>>, vector<1x256xf32>
    %c3 = arith.constant 3 : index
    %c0_23 = arith.constant 0 : index
    %13 = vector.load %arg2[%c3, %c0_23] : memref<9x256xf32, #tpu.memory_space<vmem>>, vector<1x256xf32>
    %c5 = arith.constant 5 : index
    %c0_24 = arith.constant 0 : index
    %14 = vector.load %arg2[%c5, %c0_24] : memref<9x256xf32, #tpu.memory_space<vmem>>, vector<1x256xf32>
    %c6 = arith.constant 6 : index
    %c0_25 = arith.constant 0 : index
    %15 = vector.load %arg2[%c6, %c0_25] : memref<9x256xf32, #tpu.memory_space<vmem>>, vector<1x256xf32>
    %c7 = arith.constant 7 : index
    %c0_26 = arith.constant 0 : index
    %16 = vector.load %arg2[%c7, %c0_26] : memref<9x256xf32, #tpu.memory_space<vmem>>, vector<1x256xf32>
    %c8 = arith.constant 8 : index
    %c0_27 = arith.constant 0 : index
    %17 = vector.load %arg2[%c8, %c0_27] : memref<9x256xf32, #tpu.memory_space<vmem>>, vector<1x256xf32>
    %c0_28 = arith.constant 0 : index
    %c0_29 = arith.constant 0 : index
    %c0_30 = arith.constant 0 : index
    %18 = vector.load %arg1[%c0_28, %c0_29, %c0_30] : memref<1x4x256xf32, #tpu.memory_space<vmem>>, vector<1x4x256xf32>
    %19 = vector.shape_cast %18 : vector<1x4x256xf32> to vector<4x256xf32>
    %c17_i32 = arith.constant 17 : i32
    %20 = tpu.dynamic_rotate %19 by %c17_i32 dim 1 : vector<4x256xf32>, i32 -> vector<4x256xf32>
    %21 = vector.broadcast %10 : vector<1x256xf32> to vector<4x256xf32>
    %22 = arith.mulf %20, %21 : vector<4x256xf32>
    %c16_i32 = arith.constant 16 : i32
    %23 = tpu.dynamic_rotate %19 by %c16_i32 dim 1 : vector<4x256xf32>, i32 -> vector<4x256xf32>
    %24 = vector.broadcast %11 : vector<1x256xf32> to vector<4x256xf32>
    %25 = arith.mulf %23, %24 : vector<4x256xf32>
    %c15_i32 = arith.constant 15 : i32
    %26 = tpu.dynamic_rotate %19 by %c15_i32 dim 1 : vector<4x256xf32>, i32 -> vector<4x256xf32>
    %27 = vector.broadcast %12 : vector<1x256xf32> to vector<4x256xf32>
    %28 = arith.mulf %26, %27 : vector<4x256xf32>
    %c1_i32 = arith.constant 1 : i32
    %29 = tpu.dynamic_rotate %19 by %c1_i32 dim 1 : vector<4x256xf32>, i32 -> vector<4x256xf32>
    %30 = vector.broadcast %13 : vector<1x256xf32> to vector<4x256xf32>
    %31 = arith.mulf %29, %30 : vector<4x256xf32>
    %c255_i32 = arith.constant 255 : i32
    %32 = tpu.dynamic_rotate %19 by %c255_i32 dim 1 : vector<4x256xf32>, i32 -> vector<4x256xf32>
    %33 = vector.broadcast %14 : vector<1x256xf32> to vector<4x256xf32>
    %34 = arith.mulf %32, %33 : vector<4x256xf32>
    %c241_i32 = arith.constant 241 : i32
    %35 = tpu.dynamic_rotate %19 by %c241_i32 dim 1 : vector<4x256xf32>, i32 -> vector<4x256xf32>
    %36 = vector.broadcast %15 : vector<1x256xf32> to vector<4x256xf32>
    %37 = arith.mulf %35, %36 : vector<4x256xf32>
    %c240_i32 = arith.constant 240 : i32
    %38 = tpu.dynamic_rotate %19 by %c240_i32 dim 1 : vector<4x256xf32>, i32 -> vector<4x256xf32>
    %39 = vector.broadcast %16 : vector<1x256xf32> to vector<4x256xf32>
    %40 = arith.mulf %38, %39 : vector<4x256xf32>
    %c239_i32 = arith.constant 239 : i32
    %41 = tpu.dynamic_rotate %19 by %c239_i32 dim 1 : vector<4x256xf32>, i32 -> vector<4x256xf32>
    %42 = vector.broadcast %17 : vector<1x256xf32> to vector<4x256xf32>
    %43 = arith.mulf %41, %42 : vector<4x256xf32>
    %44 = tpu.concatenate %22, %25, %28, %31, %19, %34, %37, %40, %43 in 0 : vector<4x256xf32>, vector<4x256xf32>, vector<4x256xf32>, vector<4x256xf32>, vector<4x256xf32>, vector<4x256xf32>, vector<4x256xf32>, vector<4x256xf32>, vector<4x256xf32> -> vector<36x256xf32>
    %45 = arith.truncf %44 : vector<36x256xf32> to vector<36x256xbf16>
    %cst = arith.constant dense<0.000000e+00> : vector<4x256xf32>
    %46 = tpu.matmul %0, %45, %cst {dimension_numbers = #tpu.dot_dimension_numbers<[1], [0], [0], [1], [0, 0, 1, 1], [], []>} : vector<4x36xbf16>, vector<36x256xbf16>, vector<4x256xf32> -> vector<4x256xf32>
    %cst_31 = arith.constant dense<0.000000e+00> : vector<4xf32>
    %47 = vector.multi_reduction <add>, %46, %cst_31 [1] : vector<4x256xf32> to vector<4xf32>
    %48 = vector.shape_cast %47 : vector<4xf32> to vector<4x1xf32>
    %cst_32 = arith.constant 3.906250e-03 : f32
    %49 = vector.broadcast %cst_32 : f32 to vector<4x1xf32>
    %50 = arith.mulf %48, %49 : vector<4x1xf32>
    %51 = vector.broadcast %50 : vector<4x1xf32> to vector<4x256xf32>
    %52 = arith.subf %46, %51 : vector<4x256xf32>
    %53 = arith.mulf %52, %52 : vector<4x256xf32>
    %cst_33 = arith.constant dense<0.000000e+00> : vector<4xf32>
    %54 = vector.multi_reduction <add>, %53, %cst_33 [1] : vector<4x256xf32> to vector<4xf32>
    %55 = vector.shape_cast %54 : vector<4xf32> to vector<4x1xf32>
    %cst_34 = arith.constant 3.906250e-03 : f32
    %56 = vector.broadcast %cst_34 : f32 to vector<4x1xf32>
    %57 = arith.mulf %55, %56 : vector<4x1xf32>
    %cst_35 = arith.constant 9.99999974E-6 : f32
    %58 = vector.broadcast %cst_35 : f32 to vector<4x1xf32>
    %59 = arith.addf %57, %58 : vector<4x1xf32>
    %60 = math.rsqrt %59 : vector<4x1xf32>
    %61 = vector.broadcast %60 : vector<4x1xf32> to vector<4x256xf32>
    %62 = arith.mulf %52, %61 : vector<4x256xf32>
    %63 = vector.broadcast %2 : vector<4x1xf32> to vector<4x256xf32>
    %64 = arith.mulf %62, %63 : vector<4x256xf32>
    %65 = vector.broadcast %3 : vector<4x1xf32> to vector<4x256xf32>
    %66 = arith.addf %64, %65 : vector<4x256xf32>
    %cst_36 = arith.constant 0.000000e+00 : f32
    %67 = vector.broadcast %cst_36 : f32 to vector<4x256xf32>
    %68 = arith.maximumf %66, %67 : vector<4x256xf32>
    %c17_i32_37 = arith.constant 17 : i32
    %69 = tpu.dynamic_rotate %68 by %c17_i32_37 dim 1 : vector<4x256xf32>, i32 -> vector<4x256xf32>
    %70 = vector.broadcast %10 : vector<1x256xf32> to vector<4x256xf32>
    %71 = arith.mulf %69, %70 : vector<4x256xf32>
    %c16_i32_38 = arith.constant 16 : i32
    %72 = tpu.dynamic_rotate %68 by %c16_i32_38 dim 1 : vector<4x256xf32>, i32 -> vector<4x256xf32>
    %73 = vector.broadcast %11 : vector<1x256xf32> to vector<4x256xf32>
    %74 = arith.mulf %72, %73 : vector<4x256xf32>
    %c15_i32_39 = arith.constant 15 : i32
    %75 = tpu.dynamic_rotate %68 by %c15_i32_39 dim 1 : vector<4x256xf32>, i32 -> vector<4x256xf32>
    %76 = vector.broadcast %12 : vector<1x256xf32> to vector<4x256xf32>
    %77 = arith.mulf %75, %76 : vector<4x256xf32>
    %c1_i32_40 = arith.constant 1 : i32
    %78 = tpu.dynamic_rotate %68 by %c1_i32_40 dim 1 : vector<4x256xf32>, i32 -> vector<4x256xf32>
    %79 = vector.broadcast %13 : vector<1x256xf32> to vector<4x256xf32>
    %80 = arith.mulf %78, %79 : vector<4x256xf32>
    %c255_i32_41 = arith.constant 255 : i32
    %81 = tpu.dynamic_rotate %68 by %c255_i32_41 dim 1 : vector<4x256xf32>, i32 -> vector<4x256xf32>
    %82 = vector.broadcast %14 : vector<1x256xf32> to vector<4x256xf32>
    %83 = arith.mulf %81, %82 : vector<4x256xf32>
    %c241_i32_42 = arith.constant 241 : i32
    %84 = tpu.dynamic_rotate %68 by %c241_i32_42 dim 1 : vector<4x256xf32>, i32 -> vector<4x256xf32>
    %85 = vector.broadcast %15 : vector<1x256xf32> to vector<4x256xf32>
    %86 = arith.mulf %84, %85 : vector<4x256xf32>
    %c240_i32_43 = arith.constant 240 : i32
    %87 = tpu.dynamic_rotate %68 by %c240_i32_43 dim 1 : vector<4x256xf32>, i32 -> vector<4x256xf32>
    %88 = vector.broadcast %16 : vector<1x256xf32> to vector<4x256xf32>
    %89 = arith.mulf %87, %88 : vector<4x256xf32>
    %c239_i32_44 = arith.constant 239 : i32
    %90 = tpu.dynamic_rotate %68 by %c239_i32_44 dim 1 : vector<4x256xf32>, i32 -> vector<4x256xf32>
    %91 = vector.broadcast %17 : vector<1x256xf32> to vector<4x256xf32>
    %92 = arith.mulf %90, %91 : vector<4x256xf32>
    %93 = tpu.concatenate %71, %74, %77, %80, %68, %83, %86, %89, %92 in 0 : vector<4x256xf32>, vector<4x256xf32>, vector<4x256xf32>, vector<4x256xf32>, vector<4x256xf32>, vector<4x256xf32>, vector<4x256xf32>, vector<4x256xf32>, vector<4x256xf32> -> vector<36x256xf32>
    %94 = arith.truncf %93 : vector<36x256xf32> to vector<36x256xbf16>
    %cst_45 = arith.constant dense<0.000000e+00> : vector<4x256xf32>
    %95 = tpu.matmul %1, %94, %cst_45 {dimension_numbers = #tpu.dot_dimension_numbers<[1], [0], [0], [1], [0, 0, 1, 1], [], []>} : vector<4x36xbf16>, vector<36x256xbf16>, vector<4x256xf32> -> vector<4x256xf32>
    %cst_46 = arith.constant dense<0.000000e+00> : vector<4xf32>
    %96 = vector.multi_reduction <add>, %95, %cst_46 [1] : vector<4x256xf32> to vector<4xf32>
    %97 = vector.shape_cast %96 : vector<4xf32> to vector<4x1xf32>
    %cst_47 = arith.constant 3.906250e-03 : f32
    %98 = vector.broadcast %cst_47 : f32 to vector<4x1xf32>
    %99 = arith.mulf %97, %98 : vector<4x1xf32>
    %100 = vector.broadcast %99 : vector<4x1xf32> to vector<4x256xf32>
    %101 = arith.subf %95, %100 : vector<4x256xf32>
    %102 = arith.mulf %101, %101 : vector<4x256xf32>
    %cst_48 = arith.constant dense<0.000000e+00> : vector<4xf32>
    %103 = vector.multi_reduction <add>, %102, %cst_48 [1] : vector<4x256xf32> to vector<4xf32>
    %104 = vector.shape_cast %103 : vector<4xf32> to vector<4x1xf32>
    %cst_49 = arith.constant 3.906250e-03 : f32
    %105 = vector.broadcast %cst_49 : f32 to vector<4x1xf32>
    %106 = arith.mulf %104, %105 : vector<4x1xf32>
    %cst_50 = arith.constant 9.99999974E-6 : f32
    %107 = vector.broadcast %cst_50 : f32 to vector<4x1xf32>
    %108 = arith.addf %106, %107 : vector<4x1xf32>
    %109 = math.rsqrt %108 : vector<4x1xf32>
    %110 = vector.broadcast %109 : vector<4x1xf32> to vector<4x256xf32>
    %111 = arith.mulf %101, %110 : vector<4x256xf32>
    %112 = vector.broadcast %4 : vector<4x1xf32> to vector<4x256xf32>
    %113 = arith.mulf %111, %112 : vector<4x256xf32>
    %114 = vector.broadcast %5 : vector<4x1xf32> to vector<4x256xf32>
    %115 = arith.addf %113, %114 : vector<4x256xf32>
    %cst_51 = arith.constant dense<0.000000e+00> : vector<4xf32>
    %116 = vector.multi_reduction <add>, %115, %cst_51 [1] : vector<4x256xf32> to vector<4xf32>
    %117 = vector.shape_cast %116 : vector<4xf32> to vector<4x1xf32>
    %cst_52 = arith.constant 3.906250e-03 : f32
    %118 = vector.broadcast %cst_52 : f32 to vector<4x1xf32>
    %119 = arith.mulf %117, %118 : vector<4x1xf32>
    %cst_53 = arith.constant dense<0.000000e+00> : vector<1x1xf32>
    %120 = tpu.matmul %6, %119, %cst_53 {dimension_numbers = #tpu.dot_dimension_numbers<[1], [0], [0], [1], [0, 0, 1, 1], [], []>} : vector<1x4xf32>, vector<4x1xf32>, vector<1x1xf32> -> vector<1x1xf32>
    %121 = arith.addf %120, %7 : vector<1x1xf32>
    %cst_54 = arith.constant 0.000000e+00 : f32
    %122 = vector.broadcast %cst_54 : f32 to vector<1x1xf32>
    %123 = arith.maximumf %121, %122 : vector<1x1xf32>
    %cst_55 = arith.constant dense<0.000000e+00> : vector<4x1xf32>
    %124 = tpu.matmul %8, %123, %cst_55 {dimension_numbers = #tpu.dot_dimension_numbers<[1], [0], [0], [1], [0, 0, 1, 1], [], []>} : vector<4x1xf32>, vector<1x1xf32>, vector<4x1xf32> -> vector<4x1xf32>
    %125 = arith.addf %124, %9 : vector<4x1xf32>
    %126 = arith.negf %125 : vector<4x1xf32>
    %127 = math.exp %126 : vector<4x1xf32>
    %cst_56 = arith.constant 1.000000e+00 : f32
    %128 = vector.broadcast %cst_56 : f32 to vector<4x1xf32>
    %129 = arith.addf %128, %127 : vector<4x1xf32>
    %130 = arith.divf %128, %129 : vector<4x1xf32>
    %131 = vector.broadcast %130 : vector<4x1xf32> to vector<4x256xf32>
    %132 = arith.mulf %115, %131 : vector<4x256xf32>
    %133 = arith.addf %132, %19 : vector<4x256xf32>
    %cst_57 = arith.constant 0.000000e+00 : f32
    %134 = vector.broadcast %cst_57 : f32 to vector<4x256xf32>
    %135 = arith.maximumf %133, %134 : vector<4x256xf32>
    %c0_58 = arith.constant 0 : index
    %c0_59 = arith.constant 0 : index
    %c0_60 = arith.constant 0 : index
    %136 = vector.load %arg13[%c0_58, %c0_59, %c0_60] : memref<1x4x256xf32, #tpu.memory_space<vmem>>, vector<1x4x256xf32>
    %137 = vector.shape_cast %136 : vector<1x4x256xf32> to vector<4x256xf32>
    %138 = vector.shape_cast %135 : vector<4x256xf32> to vector<1x4x256xf32>
    tpu.vector_store %arg13[%c0_58, %c0_59, %c0_60], %138 {strides = array<i32>} : memref<1x4x256xf32, #tpu.memory_space<vmem>>, vector<1x4x256xf32>,
    return
  }
  func.func @transform_0(%arg0: i32) -> (i32, i32, i32) {
    %c0_i32 = arith.constant 0 : i32
    %c0_i32_0 = arith.constant 0 : i32
    %c0_i32_1 = arith.constant 0 : i32
    return %arg0, %c0_i32, %c0_i32_0 : i32, i32, i32
  }
  func.func @transform_1(%arg0: i32) -> (i32, i32) {
    %c0_i32 = arith.constant 0 : i32
    %c0_i32_0 = arith.constant 0 : i32
    %c0_i32_1 = arith.constant 0 : i32
    return %c0_i32, %c0_i32_0 : i32, i32
  }
  func.func @transform_2(%arg0: i32) -> (i32, i32) {
    %c0_i32 = arith.constant 0 : i32
    %c0_i32_0 = arith.constant 0 : i32
    %c0_i32_1 = arith.constant 0 : i32
    return %c0_i32, %c0_i32_0 : i32, i32
  }
  func.func @transform_3(%arg0: i32) -> (i32, i32) {
    %c0_i32 = arith.constant 0 : i32
    %c0_i32_0 = arith.constant 0 : i32
    %c0_i32_1 = arith.constant 0 : i32
    return %c0_i32, %c0_i32_0 : i32, i32
  }
  func.func @transform_4(%arg0: i32) -> (i32, i32) {
    %c0_i32 = arith.constant 0 : i32
    %c0_i32_0 = arith.constant 0 : i32
    %c0_i32_1 = arith.constant 0 : i32
    return %c0_i32, %c0_i32_0 : i32, i32
  }
  func.func @transform_5(%arg0: i32) -> (i32, i32) {
    %c0_i32 = arith.constant 0 : i32
    %c0_i32_0 = arith.constant 0 : i32
    %c0_i32_1 = arith.constant 0 : i32
    return %c0_i32, %c0_i32_0 : i32, i32
  }
  func.func @transform_6(%arg0: i32) -> (i32, i32) {
    %c0_i32 = arith.constant 0 : i32
    %c0_i32_0 = arith.constant 0 : i32
    %c0_i32_1 = arith.constant 0 : i32
    return %c0_i32, %c0_i32_0 : i32, i32
  }
  func.func @transform_7(%arg0: i32) -> (i32, i32) {
    %c0_i32 = arith.constant 0 : i32
    %c0_i32_0 = arith.constant 0 : i32
    %c0_i32_1 = arith.constant 0 : i32
    return %c0_i32, %c0_i32_0 : i32, i32
  }
  func.func @transform_8(%arg0: i32) -> (i32, i32) {
    %c0_i32 = arith.constant 0 : i32
    %c0_i32_0 = arith.constant 0 : i32
    %c0_i32_1 = arith.constant 0 : i32
    return %c0_i32, %c0_i32_0 : i32, i32
  }
  func.func @transform_9(%arg0: i32) -> (i32, i32) {
    %c0_i32 = arith.constant 0 : i32
    %c0_i32_0 = arith.constant 0 : i32
    %c0_i32_1 = arith.constant 0 : i32
    return %c0_i32, %c0_i32_0 : i32, i32
  }
  func.func @transform_10(%arg0: i32) -> (i32, i32) {
    %c0_i32 = arith.constant 0 : i32
    %c0_i32_0 = arith.constant 0 : i32
    %c0_i32_1 = arith.constant 0 : i32
    return %c0_i32, %c0_i32_0 : i32, i32
  }
  func.func @transform_11(%arg0: i32) -> (i32, i32) {
    %c0_i32 = arith.constant 0 : i32
    %c0_i32_0 = arith.constant 0 : i32
    %c0_i32_1 = arith.constant 0 : i32
    return %c0_i32, %c0_i32_0 : i32, i32
  }
  func.func @transform_12(%arg0: i32) -> (i32, i32, i32) {
    %c0_i32 = arith.constant 0 : i32
    %c0_i32_0 = arith.constant 0 : i32
    %c0_i32_1 = arith.constant 0 : i32
    return %arg0, %c0_i32, %c0_i32_0 : i32, i32, i32
  }
}

</mosaic_0001>

<llo_original>
// kernel: basic_block_forward.1
$region0: #{basic_block_forward.1}
  #allocation0 [shape = 'u32[]', space=smem, size = 0x4, offset = 0x4, fixed_abs, tag = 'smem constant byte address 0x4 - core index']
  #allocation1 [shape = 'u32[144,128]{1,0:T(1,128)}', space=vmem, size = 0x12000, scoped, tag = 'internal scratch']
  #allocation2 [shape = 'f32[1,1]{1,0:T(1,128)S(1)}', space=vmem, size = 0x200, scoped, tag = 'scoped memory for basic_block_forward.1']
  %s0 = inlined_call_operand.vmem [shape: f32[2,4,256], index: 0, kind: input, shape index: {}]
  %s1 = inlined_call_operand.vmem [shape: f32[9,256], index: 1, kind: input, shape index: {}]
  %s2 = inlined_call_operand.vmem [shape: bf16[4,36], index: 2, kind: input, shape index: {}]
  %s3 = inlined_call_operand.vmem [shape: f32[4,1], index: 3, kind: input, shape index: {}]
  %s4 = inlined_call_operand.vmem [shape: f32[4,1], index: 4, kind: input, shape index: {}]
  %s5 = inlined_call_operand.vmem [shape: bf16[4,36], index: 5, kind: input, shape index: {}]
  %s6 = inlined_call_operand.vmem [shape: f32[4,1], index: 6, kind: input, shape index: {}]
  %s7 = inlined_call_operand.vmem [shape: f32[4,1], index: 7, kind: input, shape index: {}]
  %s8 = inlined_call_operand.vmem [shape: f32[1,4], index: 8, kind: input, shape index: {}]
  %s9 = inlined_call_operand.<no memory space> [shape: f32[1,1], index: 9, kind: input, shape index: {}]
  %s10 = inlined_call_operand.vmem [shape: f32[4,1], index: 10, kind: input, shape index: {}]
  %s11 = inlined_call_operand.vmem [shape: f32[4,1], index: 11, kind: input, shape index: {}]
  %s12 = inlined_call_operand.vmem [shape: f32[2,4,256], index: 12, kind: output, shape index: {}]
  %s13 = sld [smem:[#allocation0]]
  $region81: #{basic_block_forward.1} parent=0
    _
  %s15 = ssub.s32 1, %s13
  %s16 = scalar_select 0, %s15, %s13
  %v17 = vstv %s9
  %18 = vst [vmem:[#allocation2] sm:$0x1] %v17
  loop: start=0, step=1, limit=4
  $region2: #{basic_block_forward.1} parent=0 // loop_pre_header
    _
  $region3: #{basic_block_forward.1} parent=0 // loop_header
    %s20 = sphi 0, %s24
    %p21 = scmp.ge.s32.totalorder %s20, 4
    %s30 = sphi 0, %s32
    %s33 = sphi 0, %s30
    %s34 = sphi 0, %s33
    %s50 = sphi 0, %s34
    %s54 = sphi 0, %s54
    %s56 = sphi 0, %s54
    %s57 = sphi 0, %s56
    %s71 = sphi 0, %s57
    %s75 = sphi 0, %s75
    %s77 = sphi 0, %s75
    %s78 = sphi 0, %s77
    %s92 = sphi 0, %s78
    %s96 = sphi 0, %s96
    %s98 = sphi 0, %s96
    %s99 = sphi 0, %s98
    %s113 = sphi 0, %s99
    %s117 = sphi 0, %s117
    %s119 = sphi 0, %s117
    %s120 = sphi 0, %s119
    %s134 = sphi 0, %s120
    %s138 = sphi 0, %s138
    %s140 = sphi 0, %s138
    %s141 = sphi 0, %s140
    %s155 = sphi 0, %s141
    %s159 = sphi 0, %s159
    %s161 = sphi 0, %s159
    %s162 = sphi 0, %s161
    %s176 = sphi 0, %s162
    %s180 = sphi 0, %s180
    %s182 = sphi 0, %s180
    %s183 = sphi 0, %s182
    %s197 = sphi 0, %s183
    %s201 = sphi 0, %s201
    %s203 = sphi 0, %s201
    %s204 = sphi 0, %s203
    %s218 = sphi 0, %s204
    %s222 = sphi 0, %s222
    %s224 = sphi 0, %s222
    %s225 = sphi 0, %s224
    %s239 = sphi 0, %s225
    %s243 = sphi 0, %s243
    %s245 = sphi 0, %s243
    %s246 = sphi 0, %s245
    %s260 = sphi 0, %s246
    %s264 = sphi 0, %s264
    %s266 = sphi 0, %s264
    %s267 = sphi 0, %s266
    %s281 = sphi 0, %s267
    %s287 = sphi 0, %s289
    %s290 = sphi 0, %s287
    %s291 = sphi 0, %s290
    %s307 = sphi 0, %s291
  $region4: #{basic_block_forward.1} parent=0 // loop_header_branch
    %23 = sbr.rel (%p21) target = $region8
  $region5: #{basic_block_forward.1} parent=0 // loop_body
    %s25 = ssub.s32 %s20, 1
    %s26 = ssub.s32 %s20, 2
    %s27 = sadd.s32 %s20, 1
    %s28 = ssub.s32 %s20, %s27
    %p29 = scmp.eq.s32.totalorder %s28, 0
    %s31 = sadd.s32 %s30, 1
    %s32 = scalar_select %p29, %s30, %s31
    %p35 = pneg %p29
    %p36 = scmp.eq.s32.totalorder %s20, 1
    %p37 = por %p35, %p36
    %p38 = scmp.ne.s32.totalorder %s30, %s33
    %p39 = scmp.eq.s32.totalorder %s20, 0
    %p40 = por %p38, %p39
    %p41 = scmp.ne.s32.totalorder %s30, %s33
    %p42 = scmp.eq.s32.totalorder %s25, 1
    %p43 = por %p41, %p42
    %p44 = scmp.ne.s32.totalorder %s33, %s34
    %p45 = scmp.eq.s32.totalorder %s25, 0
    %p46 = por %p44, %p45
    %p47 = scmp.ne.s32.totalorder %s33, %s34
    %p48 = scmp.eq.s32.totalorder %s26, 1
    %p49 = por %p47, %p48
    %p51 = scmp.ne.s32.totalorder %s34, %s50
    %p52 = scmp.eq.s32.totalorder %s26, 0
    %p53 = por %p51, %p52
    %s55 = sadd.s32 %s54, 1
    %p58 = scmp.eq.s32.totalorder %s20, 1
    %p59 = scmp.ne.s32.totalorder %s54, %s56
    %p60 = scmp.eq.s32.totalorder %s20, 0
    %p61 = por %p59, %p60
    %p62 = scmp.ne.s32.totalorder %s54, %s56
    %p63 = scmp.eq.s32.totalorder %s25, 1
    %p64 = por %p62, %p63
    %p65 = scmp.ne.s32.totalorder %s56, %s57
    %p66 = scmp.eq.s32.totalorder %s25, 0
    %p67 = por %p65, %p66
    %p68 = scmp.ne.s32.totalorder %s56, %s57
    %p69 = scmp.eq.s32.totalorder %s26, 1
    %p70 = por %p68, %p69
    %p72 = scmp.ne.s32.totalorder %s57, %s71
    %p73 = scmp.eq.s32.totalorder %s26, 0
    %p74 = por %p72, %p73
    %s76 = sadd.s32 %s75, 1
    %p79 = scmp.eq.s32.totalorder %s20, 1
    %p80 = scmp.ne.s32.totalorder %s75, %s77
    %p81 = scmp.eq.s32.totalorder %s20, 0
    %p82 = por %p80, %p81
    %p83 = scmp.ne.s32.totalorder %s75, %s77
    %p84 = scmp.eq.s32.totalorder %s25, 1
    %p85 = por %p83, %p84
    %p86 = scmp.ne.s32.totalorder %s77, %s78
    %p87 = scmp.eq.s32.totalorder %s25, 0
    %p88 = por %p86, %p87
    %p89 = scmp.ne.s32.totalorder %s77, %s78
    %p90 = scmp.eq.s32.totalorder %s26, 1
    %p91 = por %p89, %p90
    %p93 = scmp.ne.s32.totalorder %s78, %s92
    %p94 = scmp.eq.s32.totalorder %s26, 0
    %p95 = por %p93, %p94
    %s97 = sadd.s32 %s96, 1
    %p100 = scmp.eq.s32.totalorder %s20, 1
    %p101 = scmp.ne.s32.totalorder %s96, %s98
    %p102 = scmp.eq.s32.totalorder %s20, 0
    %p103 = por %p101, %p102
    %p104 = scmp.ne.s32.totalorder %s96, %s98
    %p105 = scmp.eq.s32.totalorder %s25, 1
    %p106 = por %p104, %p105
    %p107 = scmp.ne.s32.totalorder %s98, %s99
    %p108 = scmp.eq.s32.totalorder %s25, 0
    %p109 = por %p107, %p108
    %p110 = scmp.ne.s32.totalorder %s98, %s99
    %p111 = scmp.eq.s32.totalorder %s26, 1
    %p112 = por %p110, %p111
    %p114 = scmp.ne.s32.totalorder %s99, %s113
    %p115 = scmp.eq.s32.totalorder %s26, 0
    %p116 = por %p114, %p115
    %s118 = sadd.s32 %s117, 1
    %p121 = scmp.eq.s32.totalorder %s20, 1
    %p122 = scmp.ne.s32.totalorder %s117, %s119
    %p123 = scmp.eq.s32.totalorder %s20, 0
    %p124 = por %p122, %p123
    %p125 = scmp.ne.s32.totalorder %s117, %s119
    %p126 = scmp.eq.s32.totalorder %s25, 1
    %p127 = por %p125, %p126
    %p128 = scmp.ne.s32.totalorder %s119, %s120
    %p129 = scmp.eq.s32.totalorder %s25, 0
    %p130 = por %p128, %p129
    %p131 = scmp.ne.s32.totalorder %s119, %s120
    %p132 = scmp.eq.s32.totalorder %s26, 1
    %p133 = por %p131, %p132
    %p135 = scmp.ne.s32.totalorder %s120, %s134
    %p136 = scmp.eq.s32.totalorder %s26, 0
    %p137 = por %p135, %p136
    %s139 = sadd.s32 %s138, 1
    %p142 = scmp.eq.s32.totalorder %s20, 1
    %p143 = scmp.ne.s32.totalorder %s138, %s140
    %p144 = scmp.eq.s32.totalorder %s20, 0
    %p145 = por %p143, %p144
    %p146 = scmp.ne.s32.totalorder %s138, %s140
    %p147 = scmp.eq.s32.totalorder %s25, 1
    %p148 = por %p146, %p147
    %p149 = scmp.ne.s32.totalorder %s140, %s141
    %p150 = scmp.eq.s32.totalorder %s25, 0
    %p151 = por %p149, %p150
    %p152 = scmp.ne.s32.totalorder %s140, %s141
    %p153 = scmp.eq.s32.totalorder %s26, 1
    %p154 = por %p152, %p153
    %p156 = scmp.ne.s32.totalorder %s141, %s155
    %p157 = scmp.eq.s32.totalorder %s26, 0
    %p158 = por %p156, %p157
    %s160 = sadd.s32 %s159, 1
    %p163 = scmp.eq.s32.totalorder %s20, 1
    %p164 = scmp.ne.s32.totalorder %s159, %s161
    %p165 = scmp.eq.s32.totalorder %s20, 0
    %p166 = por %p164, %p165
    %p167 = scmp.ne.s32.totalorder %s159, %s161
    %p168 = scmp.eq.s32.totalorder %s25, 1
    %p169 = por %p167, %p168
    %p170 = scmp.ne.s32.totalorder %s161, %s162
    %p171 = scmp.eq.s32.totalorder %s25, 0
    %p172 = por %p170, %p171
    %p173 = scmp.ne.s32.totalorder %s161, %s162
    %p174 = scmp.eq.s32.totalorder %s26, 1
    %p175 = por %p173, %p174
    %p177 = scmp.ne.s32.totalorder %s162, %s176
    %p178 = scmp.eq.s32.totalorder %s26, 0
    %p179 = por %p177, %p178
    %s181 = sadd.s32 %s180, 1
    %p184 = scmp.eq.s32.totalorder %s20, 1
    %p185 = scmp.ne.s32.totalorder %s180, %s182
    %p186 = scmp.eq.s32.totalorder %s20, 0
    %p187 = por %p185, %p186
    %p188 = scmp.ne.s32.totalorder %s180, %s182
    %p189 = scmp.eq.s32.totalorder %s25, 1
    %p190 = por %p188, %p189
    %p191 = scmp.ne.s32.totalorder %s182, %s183
    %p192 = scmp.eq.s32.totalorder %s25, 0
    %p193 = por %p191, %p192
    %p194 = scmp.ne.s32.totalorder %s182, %s183
    %p195 = scmp.eq.s32.totalorder %s26, 1
    %p196 = por %p194, %p195
    %p198 = scmp.ne.s32.totalorder %s183, %s197
    %p199 = scmp.eq.s32.totalorder %s26, 0
    %p200 = por %p198, %p199
    %s202 = sadd.s32 %s201, 1
    %p205 = scmp.eq.s32.totalorder %s20, 1
    %p206 = scmp.ne.s32.totalorder %s201, %s203
    %p207 = scmp.eq.s32.totalorder %s20, 0
    %p208 = por %p206, %p207
    %p209 = scmp.ne.s32.totalorder %s201, %s203
    %p210 = scmp.eq.s32.totalorder %s25, 1
    %p211 = por %p209, %p210
    %p212 = scmp.ne.s32.totalorder %s203, %s204
    %p213 = scmp.eq.s32.totalorder %s25, 0
    %p214 = por %p212, %p213
    %p215 = scmp.ne.s32.totalorder %s203, %s204
    %p216 = scmp.eq.s32.totalorder %s26, 1
    %p217 = por %p215, %p216
    %p219 = scmp.ne.s32.totalorder %s204, %s218
    %p220 = scmp.eq.s32.totalorder %s26, 0
    %p221 = por %p219, %p220
    %s223 = sadd.s32 %s222, 1
    %p226 = scmp.eq.s32.totalorder %s20, 1
    %p227 = scmp.ne.s32.totalorder %s222, %s224
    %p228 = scmp.eq.s32.totalorder %s20, 0
    %p229 = por %p227, %p228
    %p230 = scmp.ne.s32.totalorder %s222, %s224
    %p231 = scmp.eq.s32.totalorder %s25, 1
    %p232 = por %p230, %p231
    %p233 = scmp.ne.s32.totalorder %s224, %s225
    %p234 = scmp.eq.s32.totalorder %s25, 0
    %p235 = por %p233, %p234
    %p236 = scmp.ne.s32.totalorder %s224, %s225
    %p237 = scmp.eq.s32.totalorder %s26, 1
    %p238 = por %p236, %p237
    %p240 = scmp.ne.s32.totalorder %s225, %s239
    %p241 = scmp.eq.s32.totalorder %s26, 0
    %p242 = por %p240, %p241
    %s244 = sadd.s32 %s243, 1
    %p247 = scmp.eq.s32.totalorder %s20, 1
    %p248 = scmp.ne.s32.totalorder %s243, %s245
    %p249 = scmp.eq.s32.totalorder %s20, 0
    %p250 = por %p248, %p249
    %p251 = scmp.ne.s32.totalorder %s243, %s245
    %p252 = scmp.eq.s32.totalorder %s25, 1
    %p253 = por %p251, %p252
    %p254 = scmp.ne.s32.totalorder %s245, %s246
    %p255 = scmp.eq.s32.totalorder %s25, 0
    %p256 = por %p254, %p255
    %p257 = scmp.ne.s32.totalorder %s245, %s246
    %p258 = scmp.eq.s32.totalorder %s26, 1
    %p259 = por %p257, %p258
    %p261 = scmp.ne.s32.totalorder %s246, %s260
    %p262 = scmp.eq.s32.totalorder %s26, 0
    %p263 = por %p261, %p262
    %s265 = sadd.s32 %s264, 1
    %p268 = scmp.eq.s32.totalorder %s20, 1
    %p269 = scmp.ne.s32.totalorder %s264, %s266
    %p270 = scmp.eq.s32.totalorder %s20, 0
    %p271 = por %p269, %p270
    %p272 = scmp.ne.s32.totalorder %s264, %s266
    %p273 = scmp.eq.s32.totalorder %s25, 1
    %p274 = por %p272, %p273
    %p275 = scmp.ne.s32.totalorder %s266, %s267
    %p276 = scmp.eq.s32.totalorder %s25, 0
    %p277 = por %p275, %p276
    %p278 = scmp.ne.s32.totalorder %s266, %s267
    %p279 = scmp.eq.s32.totalorder %s26, 1
    %p280 = por %p278, %p279
    %p282 = scmp.ne.s32.totalorder %s267, %s281
    %p283 = scmp.eq.s32.totalorder %s26, 0
    %p284 = por %p282, %p283
    %s285 = ssub.s32 %s20, %s27
    %p286 = scmp.eq.s32.totalorder %s285, 0
    %s288 = sadd.s32 %s287, 1
    %s289 = scalar_select %p286, %s287, %s288
    %p292 = pneg %p286
    %p293 = scmp.eq.s32.totalorder %s20, 1
    %p294 = por %p292, %p293
    %p295 = scmp.ne.s32.totalorder %s287, %s290
    %p296 = scmp.eq.s32.totalorder %s20, 0
    %p297 = por %p295, %p296
    %p298 = scmp.ne.s32.totalorder %s287, %s290
    %p299 = scmp.eq.s32.totalorder %s25, 1
    %p300 = por %p298, %p299
    %p301 = scmp.ne.s32.totalorder %s290, %s291
    %p302 = scmp.eq.s32.totalorder %s25, 0
    %p303 = por %p301, %p302
    %p304 = scmp.ne.s32.totalorder %s290, %s291
    %p305 = scmp.eq.s32.totalorder %s26, 1
    %p306 = por %p304, %p305
    %p308 = scmp.ne.s32.totalorder %s291, %s307
    %p309 = scmp.eq.s32.totalorder %s26, 0
    %p310 = por %p308, %p309
    %p311 = scmp.le.s32.totalorder 1, %s20
    %p312 = scmp.lt.s32.totalorder %s20, 3
    %p313 = pnand %p311, %p312
    %p314 = pneg %p313
    // Predicated region
    $region9: #{basic_block_forward.1} parent=5 // pred_check
      _
    $region10: #{basic_block_forward.1} parent=5 // pred_check_branch
      %316 = sbr.rel (%p313) target = $region12
    $region11: #{basic_block_forward.1} parent=5 // pred_region
      %s317 = ssub.s32 %s20, 1
      // Predicated region
      $region13: #{basic_block_forward.1} parent=11 // pred_check
        %p318 = pneg %p67
      $region14: #{basic_block_forward.1} parent=11 // pred_check_branch
        %320 = sbr.rel (%p318) target = $region16
      $region15: #{basic_block_forward.1} parent=11 // pred_region
        _
      $region16: #{basic_block_forward.1} parent=11 // pred_fallthru
        _
      // Predicated region
      $region17: #{basic_block_forward.1} parent=11 // pred_check
        %p321 = pneg %p88
      $region18: #{basic_block_forward.1} parent=11 // pred_check_branch
        %323 = sbr.rel (%p321) target = $region20
      $region19: #{basic_block_forward.1} parent=11 // pred_region
        _
      $region20: #{basic_block_forward.1} parent=11 // pred_fallthru
        _
      // Predicated region
      $region21: #{basic_block_forward.1} parent=11 // pred_check
        %p324 = pneg %p109
      $region22: #{basic_block_forward.1} parent=11 // pred_check_branch
        %326 = sbr.rel (%p324) target = $region24
      $region23: #{basic_block_forward.1} parent=11 // pred_region
        _
      $region24: #{basic_block_forward.1} parent=11 // pred_fallthru
        _
      // Predicated region
      $region25: #{basic_block_forward.1} parent=11 // pred_check
        %p327 = pneg %p130
      $region26: #{basic_block_forward.1} parent=11 // pred_check_branch
        %329 = sbr.rel (%p327) target = $region28
      $region27: #{basic_block_forward.1} parent=11 // pred_region
        _
      $region28: #{basic_block_forward.1} parent=11 // pred_fallthru
        _
      // Predicated region
      $region29: #{basic_block_forward.1} parent=11 // pred_check
        %p330 = pneg %p151
      $region30: #{basic_block_forward.1} parent=11 // pred_check_branch
        %332 = sbr.rel (%p330) target = $region32
      $region31: #{basic_block_forward.1} parent=11 // pred_region
        _
      $region32: #{basic_block_forward.1} parent=11 // pred_fallthru
        _
      // Predicated region
      $region33: #{basic_block_forward.1} parent=11 // pred_check
        %p333 = pneg %p172
      $region34: #{basic_block_forward.1} parent=11 // pred_check_branch
        %335 = sbr.rel (%p333) target = $region36
      $region35: #{basic_block_forward.1} parent=11 // pred_region
        _
      $region36: #{basic_block_forward.1} parent=11 // pred_fallthru
        _
      // Predicated region
      $region37: #{basic_block_forward.1} parent=11 // pred_check
        %p336 = pneg %p193
      $region38: #{basic_block_forward.1} parent=11 // pred_check_branch
        %338 = sbr.rel (%p336) target = $region40
      $region39: #{basic_block_forward.1} parent=11 // pred_region
        _
      $region40: #{basic_block_forward.1} parent=11 // pred_fallthru
        _
      // Predicated region
      $region41: #{basic_block_forward.1} parent=11 // pred_check
        %p339 = pneg %p214
      $region42: #{basic_block_forward.1} parent=11 // pred_check_branch
        %341 = sbr.rel (%p339) target = $region44
      $region43: #{basic_block_forward.1} parent=11 // pred_region
        _
      $region44: #{basic_block_forward.1} parent=11 // pred_fallthru
        _
      // Predicated region
      $region45: #{basic_block_forward.1} parent=11 // pred_check
        %p342 = pneg %p235
      $region46: #{basic_block_forward.1} parent=11 // pred_check_branch
        %344 = sbr.rel (%p342) target = $region48
      $region47: #{basic_block_forward.1} parent=11 // pred_region
        _
      $region48: #{basic_block_forward.1} parent=11 // pred_fallthru
        _
      // Predicated region
      $region49: #{basic_block_forward.1} parent=11 // pred_check
        %p345 = pneg %p256
      $region50: #{basic_block_forward.1} parent=11 // pred_check_branch
        %347 = sbr.rel (%p345) target = $region52
      $region51: #{basic_block_forward.1} parent=11 // pred_region
        _
      $region52: #{basic_block_forward.1} parent=11 // pred_fallthru
        _
      // Predicated region
      $region53: #{basic_block_forward.1} parent=11 // pred_check
        %p348 = pneg %p277
      $region54: #{basic_block_forward.1} parent=11 // pred_check_branch
        %350 = sbr.rel (%p348) target = $region56
      $region55: #{basic_block_forward.1} parent=11 // pred_region
        _
      $region56: #{basic_block_forward.1} parent=11 // pred_fallthru
        _
    $region12: #{basic_block_forward.1} parent=5 // pred_fallthru
      _
    %p351 = scmp.lt.s32.totalorder %s20, 2
    // Predicated region
    $region57: #{basic_block_forward.1} parent=5 // pred_check
      %p352 = pneg %p351
    $region58: #{basic_block_forward.1} parent=5 // pred_check_branch
      %354 = sbr.rel (%p352) target = $region60
    $region59: #{basic_block_forward.1} parent=5 // pred_region
      // Predicated region
      $region61: #{basic_block_forward.1} parent=59 // pred_check
        %p355 = pneg %p40
      $region62: #{basic_block_forward.1} parent=59 // pred_check_branch
        %357 = sbr.rel (%p355) target = $region64
      $region63: #{basic_block_forward.1} parent=59 // pred_region
        %p358 = scmp.lt.s32.totalorder %s20, 1
        %s359 = scalar_select %p358, %s20, 1
        %s360 = smul.addr %s359, 2
        %s361 = smul.addr %s360, 4
        %s362 = scalar_lea.vmem %s0, %s361
      $region64: #{basic_block_forward.1} parent=59 // pred_fallthru
        _
    $region60: #{basic_block_forward.1} parent=5 // pred_fallthru
      _
    %p363 = scmp.le.s32.totalorder 1, %s20
    %p364 = scmp.lt.s32.totalorder %s20, 3
    %p365 = pnand %p363, %p364
    %p366 = pneg %p365
    // Predicated region
    $region65: #{basic_block_forward.1} parent=5 // pred_check
      _
    $region66: #{basic_block_forward.1} parent=5 // pred_check_branch
      %368 = sbr.rel (%p365) target = $region68
    $region67: #{basic_block_forward.1} parent=5 // pred_region
      %s369 = ssub.s32 %s20, 1
      %p370 = scmp.lt.s32.totalorder %s25, 1
      %s371 = scalar_select %p370, %s25, 1
      %s372 = smul.addr %s371, 2
      %s373 = smul.addr %s372, 4
      %s374 = scalar_lea.vmem %s0, %s373
      %p375 = pneg %p46
      %p376 = pneg %p43
      %p377 = pneg %p67
      %p378 = pneg %p64
      %p379 = pneg %p88
      %p380 = pneg %p85
      %p381 = pneg %p109
      %p382 = pneg %p106
      %p383 = pneg %p130
      %p384 = pneg %p127
      %p385 = pneg %p151
      %p386 = pneg %p148
      %p387 = pneg %p172
      %p388 = pneg %p169
      %p389 = pneg %p193
      %p390 = pneg %p190
      %p391 = pneg %p214
      %p392 = pneg %p211
      %p393 = pneg %p235
      %p394 = pneg %p232
      %p395 = pneg %p256
      %p396 = pneg %p253
      %p397 = pneg %p277
      %p398 = pneg %p274
      %p399 = pneg %p303
      %p400 = pneg %p300
      %p401 = scmp.lt.s32.totalorder %s25, 1
      %s402 = scalar_select %p401, %s25, 1
      %s403 = smul.addr %s402, 2
      %s404 = smul.addr %s403, 4
      %s405 = scalar_lea.vmem %s12, %s404
      %p406 = scmp.lt.s32.totalorder %s25, 1
      %s407 = scalar_select %p406, %s25, 1
      %s408 = smul.addr %s407, 2
      %s409 = smul.addr %s408, 4
      %s410 = scalar_lea.vmem %s0, %s409
      %p411 = scmp.lt.s32.totalorder %s25, 1
      %s412 = scalar_select %p411, %s25, 1
      %s413 = smul.addr %s412, 2
      %s414 = smul.addr %s413, 4
      %s415 = scalar_lea.vmem %s12, %s414
      %v417 = vld [vmem:[%s2] sm:$0x3]
      %v418 = vld [vmem:[%s5] sm:$0x3]
      %v419 = vld [vmem:[%s3] sm:$0xf]
      %v420 = vld [vmem:[%s4] sm:$0xf]
      %v421 = vld [vmem:[%s6] sm:$0xf]
      %v422 = vld [vmem:[%s7] sm:$0xf]
      %v423 = vld [vmem:[%s8] sm:$0x1]
      %v424 = vld [vmem:[#allocation2] sm:$0x1]
      %v425 = vld [vmem:[%s10] sm:$0xf]
      %v426 = vld [vmem:[%s11] sm:$0xf]
      %v427 = vld [vmem:[%s1] ss:$8 sm:$0x3]
      %s428 = scalar_lea.vmem %s1, 1
      %v429 = vld [vmem:[%s428] ss:$8 sm:$0x3]
      %s430 = scalar_lea.vmem %s1, 2
      %v431 = vld [vmem:[%s430] ss:$8 sm:$0x3]
      %s432 = scalar_lea.vmem %s1, 3
      %v433 = vld [vmem:[%s432] ss:$8 sm:$0x3]
      %s434 = scalar_lea.vmem %s1, 5
      %v435 = vld [vmem:[%s434] ss:$8 sm:$0x3]
      %s436 = scalar_lea.vmem %s1, 6
      %v437 = vld [vmem:[%s436] ss:$8 sm:$0x3]
      %s438 = scalar_lea.vmem %s1, 7
      %v439 = vld [vmem:[%s438] ss:$8 sm:$0x3]
      %s440 = scalar_lea.vmem %s1, 16
      %v441 = vld [vmem:[%s440] ss:$8 sm:$0x3]
      %v442 = vld [vmem:[%s410] sm:$0xff]
      %v444 = vcombine.high %v442, %v442
      %446 = vrot.lane.b32.xlu0 %v442, 17
      %v447 = vpop.permute.xlu0 %446
      %448 = vrot.lane.b32.xlu0 %v444, 17
      %v449 = vpop.permute.xlu0 %448
      %v450 = vlaneseq
      %v451 = vand.u32 %v450, 127
      %vm452 = vcmp.lt.s32.totalorder %v451, 17
      %v453 = vsel %vm452, %v447, %v449
      %v454 = vsel %vm452, %v449, %v447
      %v456 = vlaneseq
      %v457 = vshrl.u32 %v456, 7
      %v458 = vsub.s32 0, %v457
      %v459 = vrot.slane %v427, %v458
      %v460 = vlaneseq
      %v461 = vshrl.u32 %v460, 7
      %v462 = vsub.s32 1, %v461
      %v463 = vrot.slane %v427, %v462
      %v466 = vmul.f32 %v454, %v459
      %v467 = vmul.f32 %v453, %v463
      %468 = vrot.lane.b32.xlu0 %v442, 16
      %v469 = vpop.permute.xlu0 %468
      %470 = vrot.lane.b32.xlu0 %v444, 16
      %v471 = vpop.permute.xlu0 %470
      %vm472 = vcmp.lt.s32.totalorder %v451, 16
      %v473 = vsel %vm472, %v469, %v471
      %v474 = vsel %vm472, %v471, %v469
      %v476 = vlaneseq
      %v477 = vshrl.u32 %v476, 7
      %v478 = vsub.s32 0, %v477
      %v479 = vrot.slane %v429, %v478
      %v480 = vlaneseq
      %v481 = vshrl.u32 %v480, 7
      %v482 = vsub.s32 1, %v481
      %v483 = vrot.slane %v429, %v482
      %v486 = vmul.f32 %v474, %v479
      %v487 = vmul.f32 %v473, %v483
      %488 = vrot.lane.b32.xlu0 %v442, 15
      %v489 = vpop.permute.xlu0 %488
      %490 = vrot.lane.b32.xlu0 %v444, 15
      %v491 = vpop.permute.xlu0 %490
      %vm492 = vcmp.lt.s32.totalorder %v451, 15
      %v493 = vsel %vm492, %v489, %v491
      %v494 = vsel %vm492, %v491, %v489
      %v496 = vlaneseq
      %v497 = vshrl.u32 %v496, 7
      %v498 = vsub.s32 0, %v497
      %v499 = vrot.slane %v431, %v498
      %v500 = vlaneseq
      %v501 = vshrl.u32 %v500, 7
      %v502 = vsub.s32 1, %v501
      %v503 = vrot.slane %v431, %v502
      %v506 = vmul.f32 %v494, %v499
      %v507 = vmul.f32 %v493, %v503
      %508 = vrot.lane.b32.xlu0 %v442, 1
      %v509 = vpop.permute.xlu0 %508
      %510 = vrot.lane.b32.xlu0 %v444, 1
      %v511 = vpop.permute.xlu0 %510
      %vm512 = vcmp.lt.s32.totalorder %v451, 1
      %v513 = vsel %vm512, %v509, %v511
      %v514 = vsel %vm512, %v511, %v509
      %v516 = vlaneseq
      %v517 = vshrl.u32 %v516, 7
      %v518 = vsub.s32 0, %v517
      %v519 = vrot.slane %v433, %v518
      %v520 = vlaneseq
      %v521 = vshrl.u32 %v520, 7
      %v522 = vsub.s32 1, %v521
      %v523 = vrot.slane %v433, %v522
      %v526 = vmul.f32 %v514, %v519
      %v527 = vmul.f32 %v513, %v523
      %528 = vrot.lane.b32.xlu0 %v442, 127
      %v529 = vpop.permute.xlu0 %528
      %530 = vrot.lane.b32.xlu0 %v444, 127
      %v531 = vpop.permute.xlu0 %530
      %vm532 = vcmp.lt.s32.totalorder %v451, 127
      %v533 = vsel %vm532, %v529, %v531
      %v534 = vsel %vm532, %v531, %v529
      %v536 = vlaneseq
      %v537 = vshrl.u32 %v536, 7
      %v538 = vsub.s32 0, %v537
      %v539 = vrot.slane %v435, %v538
      %v540 = vlaneseq
      %v541 = vshrl.u32 %v540, 7
      %v542 = vsub.s32 1, %v541
      %v543 = vrot.slane %v435, %v542
      %v546 = vmul.f32 %v533, %v539
      %v547 = vmul.f32 %v534, %v543
      %548 = vrot.lane.b32.xlu0 %v442, 113
      %v549 = vpop.permute.xlu0 %548
      %550 = vrot.lane.b32.xlu0 %v444, 113
      %v551 = vpop.permute.xlu0 %550
      %vm552 = vcmp.lt.s32.totalorder %v451, 113
      %v553 = vsel %vm552, %v549, %v551
      %v554 = vsel %vm552, %v551, %v549
      %v556 = vlaneseq
      %v557 = vshrl.u32 %v556, 7
      %v558 = vsub.s32 0, %v557
      %v559 = vrot.slane %v437, %v558
      %v560 = vlaneseq
      %v561 = vshrl.u32 %v560, 7
      %v562 = vsub.s32 1, %v561
      %v563 = vrot.slane %v437, %v562
      %v566 = vmul.f32 %v553, %v559
      %v567 = vmul.f32 %v554, %v563
      %568 = vrot.lane.b32.xlu0 %v442, 112
      %v569 = vpop.permute.xlu0 %568
      %570 = vrot.lane.b32.xlu0 %v444, 112
      %v571 = vpop.permute.xlu0 %570
      %vm572 = vcmp.lt.s32.totalorder %v451, 112
      %v573 = vsel %vm572, %v569, %v571
      %v574 = vsel %vm572, %v571, %v569
      %v576 = vlaneseq
      %v577 = vshrl.u32 %v576, 7
      %v578 = vsub.s32 0, %v577
      %v579 = vrot.slane %v439, %v578
      %v580 = vlaneseq
      %v581 = vshrl.u32 %v580, 7
      %v582 = vsub.s32 1, %v581
      %v583 = vrot.slane %v439, %v582
      %v586 = vmul.f32 %v573, %v579
      %v587 = vmul.f32 %v574, %v583
      %588 = vrot.lane.b32.xlu0 %v442, 111
      %v589 = vpop.permute.xlu0 %588
      %590 = vrot.lane.b32.xlu0 %v444, 111
      %v591 = vpop.permute.xlu0 %590
      %vm592 = vcmp.lt.s32.totalorder %v451, 111
      %v593 = vsel %vm592, %v589, %v591
      %v594 = vsel %vm592, %v591, %v589
      %v596 = vlaneseq
      %v597 = vshrl.u32 %v596, 7
      %v598 = vsub.s32 0, %v597
      %v599 = vrot.slane %v441, %v598
      %v600 = vlaneseq
      %v601 = vshrl.u32 %v600, 7
      %v602 = vsub.s32 1, %v601
      %v603 = vrot.slane %v441, %v602
      %v606 = vmul.f32 %v593, %v599
      %v607 = vmul.f32 %v594, %v603
      %v610 = vrot.slane %v486, 4
      %v611 = vrot.slane %v487, 4
      %v616 = vrot.slane %v526, 4
      %v617 = vrot.slane %v527, 4
      %v622 = vrot.slane %v546, 4
      %v623 = vrot.slane %v547, 4
      %v628 = vrot.slane %v586, 4
      %v629 = vrot.slane %v587, 4
      %vm632 = vcmask 1043456
      %v633 = vsel %vm632, %v466, %v610
      %v634 = vsel %vm632, %v467, %v611
      %v635 = vsel %vm632, %v506, %v616
      %v636 = vsel %vm632, %v507, %v617
      %v637 = vsel %vm632, %v442, %v622
      %v638 = vsel %vm632, %v444, %v623
      %v639 = vsel %vm632, %v566, %v628
      %v640 = vsel %vm632, %v567, %v629
      %v641 = vpack.c.bf16 %v635, %v633
      %v642 = vpack.c.bf16 %v636, %v634
      %v643 = vpack.c.bf16 %v639, %v637
      %v644 = vpack.c.bf16 %v640, %v638
      %v645 = vpack.c.bf16 %v606, %v606
      %v646 = vpack.c.bf16 %v607, %v607
      %vm647 = vcmask 293888
      %v649 = vsel %vm647, %v417, 0
      %vm651 = vcmask 1041408
      %v653 = vsel %vm651, %v645, 0
      %v656 = vsel %vm651, %v646, 0
      %658 = vmatprep.subr.bf16.mxu0 %v642
      %659 = vmatpush1.bf16.msra.mxu0 %v641
      %660 = vmatprep.subr.bf16.mxu0 %v644
      %661 = vmatpush1.bf16.msra.mxu0 %v643
      %662 = vmatprep.subr.bf16.mxu0 %v656
      %663 = vmatpush1.bf16.msra.mxu0 %v653
      %664 = vmatprep.subr.bf16.mxu0 0
      %665 = vmatpush1.bf16.msra.mxu0 0
      %666 = vmatprep.subr.bf16.mxu0 0
      %667 = vmatpush1.bf16.msra.mxu0 0
      %668 = vmatprep.subr.bf16.mxu0 0
      %669 = vmatpush1.bf16.msra.mxu0 0
      %670 = vmatprep.subr.bf16.mxu0 0
      %671 = vmatpush1.bf16.msra.mxu0 0
      %672 = vmatprep.subr.bf16.mxu0 0
      %673 = vmatpush1.bf16.msra.mxu0 0
      %674 = vmatprep.subr.bf16.mxu0 0
      %675 = vmatpush1.bf16.msra.mxu0 0
      %676 = vmatprep.subr.bf16.mxu0 0
      %677 = vmatpush1.bf16.msra.mxu0 0
      %678 = vmatprep.subr.bf16.mxu0 0
      %679 = vmatpush1.bf16.msra.mxu0 0
      %680 = vmatprep.subr.bf16.mxu0 0
      %681 = vmatpush1.bf16.msra.mxu0 0
      %682 = vmatprep.subr.bf16.mxu0 0
      %683 = vmatpush1.bf16.msra.mxu0 0
      %684 = vmatprep.subr.bf16.mxu0 0
      %685 = vmatpush1.bf16.msra.mxu0 0
      %686 = vmatprep.subr.bf16.mxu0 0
      %687 = vmatpush1.bf16.msra.mxu0 0
      %688 = vmatprep.subr.bf16.mxu0 0
      %689 = vmatpush1.bf16.msra.mxu0 0
      %690 = vmatprep.mubr.bf16.mxu0 0
      %691 = vmatmul.mubr.bf16.gmra.mrb[0].mxu0 %v649
      %v692 = vpop.f32.mrb[0].mxu0
      %v693 = vadd.f32 0.0, %v692
      %v694 = vpop.f32.mrb[0].mxu0
      %v695 = vadd.f32 0.0, %v694
      %v696 = vpop.f32.mrb[0].mxu0
      %v697 = vpop.f32.mrb[0].mxu0
      %698 = vdwg.mxu0
      %v699 = vsel %vm632, %v693, 0.0
      %v700 = vsel %vm632, %v695, 0.0
      %v701 = vadd.f32 %v699, %v700
      %702 = vadd.xlane.f32.xlu0 %v701
      %v703 = vpop.xlane.xlu0 %702
      %v704 = vmul.f32 %v703, 0.00390625
      %v705 = vsub.f32 %v693, %v704
      %v706 = vsub.f32 %v695, %v704
      %v707 = vmul.f32 %v705, %v705
      %v708 = vmul.f32 %v706, %v706
      %v709 = vsel %vm632, %v707, 0.0
      %v710 = vsel %vm632, %v708, 0.0
      %v711 = vadd.f32 %v709, %v710
      %712 = vadd.xlane.f32.xlu0 %v711
      %v713 = vpop.xlane.xlu0 %712
      %v714 = vmul.f32 %v713, 0.00390625
      %v715 = vadd.f32 %v714, 1e-05
      %v716 = vrsqrt.pop %v715
      %v717 = vmul.f32 %v705, %v716
      %v718 = vmul.f32 %v706, %v716
      %720 = vset.pattern.permute.xlu0 0
      %721 = vperm.xlu0 %720, %v419
      %v722 = vpop.permute.xlu0 %721
      %v724 = vmul.f32 %v717, %v722
      %v725 = vmul.f32 %v718, %v722
      %727 = vset.pattern.permute.xlu0 0
      %728 = vperm.xlu0 %727, %v420
      %v729 = vpop.permute.xlu0 %728
      %v731 = vadd.f32 %v724, %v729
      %v732 = vadd.f32 %v725, %v729
      %v733 = vmax.f32 %v731, 0.0
      %v734 = vmax.f32 %v732, 0.0
      %735 = vrot.lane.b32.xlu0 %v733, 17
      %v736 = vpop.permute.xlu0 %735
      %737 = vrot.lane.b32.xlu0 %v734, 17
      %v738 = vpop.permute.xlu0 %737
      %v739 = vsel %vm452, %v736, %v738
      %v740 = vsel %vm452, %v738, %v736
      %v741 = vmul.f32 %v740, %v459
      %v742 = vmul.f32 %v739, %v463
      %743 = vrot.lane.b32.xlu0 %v733, 16
      %v744 = vpop.permute.xlu0 %743
      %745 = vrot.lane.b32.xlu0 %v734, 16
      %v746 = vpop.permute.xlu0 %745
      %v747 = vsel %vm472, %v744, %v746
      %v748 = vsel %vm472, %v746, %v744
      %v749 = vmul.f32 %v748, %v479
      %v750 = vmul.f32 %v747, %v483
      %751 = vrot.lane.b32.xlu0 %v733, 15
      %v752 = vpop.permute.xlu0 %751
      %753 = vrot.lane.b32.xlu0 %v734, 15
      %v754 = vpop.permute.xlu0 %753
      %v755 = vsel %vm492, %v752, %v754
      %v756 = vsel %vm492, %v754, %v752
      %v757 = vmul.f32 %v756, %v499
      %v758 = vmul.f32 %v755, %v503
      %759 = vrot.lane.b32.xlu0 %v733, 1
      %v760 = vpop.permute.xlu0 %759
      %761 = vrot.lane.b32.xlu0 %v734, 1
      %v762 = vpop.permute.xlu0 %761
      %v763 = vsel %vm512, %v760, %v762
      %v764 = vsel %vm512, %v762, %v760
      %v765 = vmul.f32 %v764, %v519
      %v766 = vmul.f32 %v763, %v523
      %767 = vrot.lane.b32.xlu0 %v733, 127
      %v768 = vpop.permute.xlu0 %767
      %769 = vrot.lane.b32.xlu0 %v734, 127
      %v770 = vpop.permute.xlu0 %769
      %v771 = vsel %vm532, %v768, %v770
      %v772 = vsel %vm532, %v770, %v768
      %v773 = vmul.f32 %v771, %v539
      %v774 = vmul.f32 %v772, %v543
      %775 = vrot.lane.b32.xlu0 %v733, 113
      %v776 = vpop.permute.xlu0 %775
      %777 = vrot.lane.b32.xlu0 %v734, 113
      %v778 = vpop.permute.xlu0 %777
      %v779 = vsel %vm552, %v776, %v778
      %v780 = vsel %vm552, %v778, %v776
      %v781 = vmul.f32 %v779, %v559
      %v782 = vmul.f32 %v780, %v563
      %783 = vrot.lane.b32.xlu0 %v733, 112
      %v784 = vpop.permute.xlu0 %783
      %785 = vrot.lane.b32.xlu0 %v734, 112
      %v786 = vpop.permute.xlu0 %785
      %v787 = vsel %vm572, %v784, %v786
      %v788 = vsel %vm572, %v786, %v784
      %v789 = vmul.f32 %v787, %v579
      %v790 = vmul.f32 %v788, %v583
      %791 = vrot.lane.b32.xlu0 %v733, 111
      %v792 = vpop.permute.xlu0 %791
      %793 = vrot.lane.b32.xlu0 %v734, 111
      %v794 = vpop.permute.xlu0 %793
      %v795 = vsel %vm592, %v792, %v794
      %v796 = vsel %vm592, %v794, %v792
      %v797 = vmul.f32 %v795, %v599
      %v798 = vmul.f32 %v796, %v603
      %v801 = vrot.slane %v749, 4
      %v802 = vrot.slane %v750, 4
      %v807 = vrot.slane %v765, 4
      %v808 = vrot.slane %v766, 4
      %v813 = vrot.slane %v773, 4
      %v814 = vrot.slane %v774, 4
      %v819 = vrot.slane %v789, 4
      %v820 = vrot.slane %v790, 4
      %v823 = vsel %vm632, %v741, %v801
      %v824 = vsel %vm632, %v742, %v802
      %v825 = vsel %vm632, %v757, %v807
      %v826 = vsel %vm632, %v758, %v808
      %v827 = vsel %vm632, %v733, %v813
      %v828 = vsel %vm632, %v734, %v814
      %v829 = vsel %vm632, %v781, %v819
      %v830 = vsel %vm632, %v782, %v820
      %v831 = vpack.c.bf16 %v825, %v823
      %v832 = vpack.c.bf16 %v826, %v824
      %v833 = vpack.c.bf16 %v829, %v827
      %v834 = vpack.c.bf16 %v830, %v828
      %v835 = vpack.c.bf16 %v797, %v797
      %v836 = vpack.c.bf16 %v798, %v798
      %v838 = vsel %vm647, %v418, 0
      %v841 = vsel %vm651, %v835, 0
      %v844 = vsel %vm651, %v836, 0
      %846 = vmatprep.subr.bf16.mxu0 %v832
      %847 = vmatpush1.bf16.msra.mxu0 %v831
      %848 = vmatprep.subr.bf16.mxu0 %v834
      %849 = vmatpush1.bf16.msra.mxu0 %v833
      %850 = vmatprep.subr.bf16.mxu0 %v844
      %851 = vmatpush1.bf16.msra.mxu0 %v841
      %852 = vmatprep.subr.bf16.mxu0 0
      %853 = vmatpush1.bf16.msra.mxu0 0
      %854 = vmatprep.subr.bf16.mxu0 0
      %855 = vmatpush1.bf16.msra.mxu0 0
      %856 = vmatprep.subr.bf16.mxu0 0
      %857 = vmatpush1.bf16.msra.mxu0 0
      %858 = vmatprep.subr.bf16.mxu0 0
      %859 = vmatpush1.bf16.msra.mxu0 0
      %860 = vmatprep.subr.bf16.mxu0 0
      %861 = vmatpush1.bf16.msra.mxu0 0
      %862 = vmatprep.subr.bf16.mxu0 0
      %863 = vmatpush1.bf16.msra.mxu0 0
      %864 = vmatprep.subr.bf16.mxu0 0
      %865 = vmatpush1.bf16.msra.mxu0 0
      %866 = vmatprep.subr.bf16.mxu0 0
      %867 = vmatpush1.bf16.msra.mxu0 0
      %868 = vmatprep.subr.bf16.mxu0 0
      %869 = vmatpush1.bf16.msra.mxu0 0
      %870 = vmatprep.subr.bf16.mxu0 0
      %871 = vmatpush1.bf16.msra.mxu0 0
      %872 = vmatprep.subr.bf16.mxu0 0
      %873 = vmatpush1.bf16.msra.mxu0 0
      %874 = vmatprep.subr.bf16.mxu0 0
      %875 = vmatpush1.bf16.msra.mxu0 0
      %876 = vmatprep.subr.bf16.mxu0 0
      %877 = vmatpush1.bf16.msra.mxu0 0
      %878 = vmatprep.mubr.bf16.mxu0 0
      %879 = vmatmul.mubr.bf16.gmra.mrb[0].mxu0 %v838
      %v880 = vpop.f32.mrb[0].mxu0
      %v881 = vadd.f32 0.0, %v880
      %v882 = vpop.f32.mrb[0].mxu0
      %v883 = vadd.f32 0.0, %v882
      %v884 = vpop.f32.mrb[0].mxu0
      %v885 = vpop.f32.mrb[0].mxu0
      %886 = vdwg.mxu0
      %v887 = vsel %vm632, %v881, 0.0
      %v888 = vsel %vm632, %v883, 0.0
      %v889 = vadd.f32 %v887, %v888
      %890 = vadd.xlane.f32.xlu0 %v889
      %v891 = vpop.xlane.xlu0 %890
      %v892 = vmul.f32 %v891, 0.00390625
      %v893 = vsub.f32 %v881, %v892
      %v894 = vsub.f32 %v883, %v892
      %v895 = vmul.f32 %v893, %v893
      %v896 = vmul.f32 %v894, %v894
      %v897 = vsel %vm632, %v895, 0.0
      %v898 = vsel %vm632, %v896, 0.0
      %v899 = vadd.f32 %v897, %v898
      %900 = vadd.xlane.f32.xlu0 %v899
      %v901 = vpop.xlane.xlu0 %900
      %v902 = vmul.f32 %v901, 0.00390625
      %v903 = vadd.f32 %v902, 1e-05
      %v904 = vrsqrt.pop %v903
      %v905 = vmul.f32 %v893, %v904
      %v906 = vmul.f32 %v894, %v904
      %908 = vset.pattern.permute.xlu0 0
      %909 = vperm.xlu0 %908, %v421
      %v910 = vpop.permute.xlu0 %909
      %v912 = vmul.f32 %v905, %v910
      %v913 = vmul.f32 %v906, %v910
      %915 = vset.pattern.permute.xlu0 0
      %916 = vperm.xlu0 %915, %v422
      %v917 = vpop.permute.xlu0 %916
      %v919 = vadd.f32 %v912, %v917
      %v920 = vadd.f32 %v913, %v917
      %v921 = vsel %vm632, %v919, 0.0
      %v922 = vsel %vm632, %v920, 0.0
      %v923 = vadd.f32 %v921, %v922
      %924 = vadd.xlane.f32.xlu0 %v923
      %v925 = vpop.xlane.xlu0 %924
      %v926 = vmul.f32 %v925, 0.00390625
      %vm927 = vcmask 31744
      %v929 = vsel %vm927, %v423, 0
      %v932 = vsel %vm632, %v926, 0
      %934 = vmatprep.subr.mxu0 0.0
      %935 = vmatpush1.msra.mxu0 %v932
      %936 = vmatprep.subr.mxu0 0.0
      %937 = vmatpush1.msra.mxu0 0.0
      %938 = vmatprep.subr.mxu0 0.0
      %939 = vmatpush1.msra.mxu0 0.0
      %940 = vmatprep.subr.mxu0 0.0
      %941 = vmatpush1.msra.mxu0 0.0
      %942 = vmatprep.subr.mxu0 0.0
      %943 = vmatpush1.msra.mxu0 0.0
      %944 = vmatprep.subr.mxu0 0.0
      %945 = vmatpush1.msra.mxu0 0.0
      %946 = vmatprep.subr.mxu0 0.0
      %947 = vmatpush1.msra.mxu0 0.0
      %948 = vmatprep.subr.mxu0 0.0
      %949 = vmatpush1.msra.mxu0 0.0
      %950 = vmatprep.subr.mxu0 0.0
      %951 = vmatpush1.msra.mxu0 0.0
      %952 = vmatprep.subr.mxu0 0.0
      %953 = vmatpush1.msra.mxu0 0.0
      %954 = vmatprep.subr.mxu0 0.0
      %955 = vmatpush1.msra.mxu0 0.0
      %956 = vmatprep.subr.mxu0 0.0
      %957 = vmatpush1.msra.mxu0 0.0
      %958 = vmatprep.subr.mxu0 0.0
      %959 = vmatpush1.msra.mxu0 0.0
      %960 = vmatprep.subr.mxu0 0.0
      %961 = vmatpush1.msra.mxu0 0.0
      %962 = vmatprep.subr.mxu0 0.0
      %963 = vmatpush1.msra.mxu0 0.0
      %964 = vmatprep.subr.mxu0 0.0
      %965 = vmatpush1.msra.mxu0 0.0
      %966 = vmatprep.subr.mxu0 0.0
      %967 = vmatpush1.msra.mxu0 0.0
      %968 = vmatprep.subr.mxu0 0.0
      %969 = vmatpush1.msra.mxu0 0.0
      %970 = vmatprep.subr.mxu0 0.0
      %971 = vmatpush1.msra.mxu0 0.0
      %972 = vmatprep.subr.mxu0 0.0
      %973 = vmatpush1.msra.mxu0 0.0
      %974 = vmatprep.subr.mxu0 0.0
      %975 = vmatpush1.msra.mxu0 0.0
      %976 = vmatprep.subr.mxu0 0.0
      %977 = vmatpush1.msra.mxu0 0.0
      %978 = vmatprep.subr.mxu0 0.0
      %979 = vmatpush1.msra.mxu0 0.0
      %980 = vmatprep.subr.mxu0 0.0
      %981 = vmatpush1.msra.mxu0 0.0
      %982 = vmatprep.subr.mxu0 0.0
      %983 = vmatpush1.msra.mxu0 0.0
      %984 = vmatprep.subr.mxu0 0.0
      %985 = vmatpush1.msra.mxu0 0.0
      %986 = vmatprep.subr.mxu0 0.0
      %987 = vmatpush1.msra.mxu0 0.0
      %988 = vmatprep.subr.mxu0 0.0
      %989 = vmatpush1.msra.mxu0 0.0
      %990 = vmatprep.subr.mxu0 0.0
      %991 = vmatpush1.msra.mxu0 0.0
      %992 = vmatprep.subr.mxu0 0.0
      %993 = vmatpush1.msra.mxu0 0.0
      %994 = vmatprep.subr.mxu0 0.0
      %995 = vmatpush1.msra.mxu0 0.0
      %996 = vmatprep.subr.mxu0 0.0
      %997 = vmatpush1.msra.mxu0 0.0
      %998 = vmatprep.mubr.f32.mxu0 0.0
      %999 = vmatmul.mubr.f32.gmra.mrb[0].mxu0 %v929
      %v1000 = vpop.f32.mrb[0].mxu0
      %v1001 = vadd.f32 %v424, %v1000
      %v1002 = vpop.f32.mrb[0].mxu0
      %1003 = vdwg.mxu0
      %v1004 = vmax.f32 %v1001, 0.0
      %vm1005 = vcmask 7168
      %v1007 = vsel %vm1005, %v425, 0
      %vm1009 = vcmask 1040384
      %v1011 = vsel %vm1009, %v1004, 0
      %1013 = vmatprep.subr.mxu0 0.0
      %1014 = vmatpush1.msra.mxu0 %v1011
      %1015 = vmatprep.subr.mxu0 0.0
      %1016 = vmatpush1.msra.mxu0 0.0
      %1017 = vmatprep.subr.mxu0 0.0
      %1018 = vmatpush1.msra.mxu0 0.0
      %1019 = vmatprep.subr.mxu0 0.0
      %1020 = vmatpush1.msra.mxu0 0.0
      %1021 = vmatprep.subr.mxu0 0.0
      %1022 = vmatpush1.msra.mxu0 0.0
      %1023 = vmatprep.subr.mxu0 0.0
      %1024 = vmatpush1.msra.mxu0 0.0
      %1025 = vmatprep.subr.mxu0 0.0
      %1026 = vmatpush1.msra.mxu0 0.0
      %1027 = vmatprep.subr.mxu0 0.0
      %1028 = vmatpush1.msra.mxu0 0.0
      %1029 = vmatprep.subr.mxu0 0.0
      %1030 = vmatpush1.msra.mxu0 0.0
      %1031 = vmatprep.subr.mxu0 0.0
      %1032 = vmatpush1.msra.mxu0 0.0
      %1033 = vmatprep.subr.mxu0 0.0
      %1034 = vmatpush1.msra.mxu0 0.0
      %1035 = vmatprep.subr.mxu0 0.0
      %1036 = vmatpush1.msra.mxu0 0.0
      %1037 = vmatprep.subr.mxu0 0.0
      %1038 = vmatpush1.msra.mxu0 0.0
      %1039 = vmatprep.subr.mxu0 0.0
      %1040 = vmatpush1.msra.mxu0 0.0
      %1041 = vmatprep.subr.mxu0 0.0
      %1042 = vmatpush1.msra.mxu0 0.0
      %1043 = vmatprep.subr.mxu0 0.0
      %1044 = vmatpush1.msra.mxu0 0.0
      %1045 = vmatprep.subr.mxu0 0.0
      %1046 = vmatpush1.msra.mxu0 0.0
      %1047 = vmatprep.subr.mxu0 0.0
      %1048 = vmatpush1.msra.mxu0 0.0
      %1049 = vmatprep.subr.mxu0 0.0
      %1050 = vmatpush1.msra.mxu0 0.0
      %1051 = vmatprep.subr.mxu0 0.0
      %1052 = vmatpush1.msra.mxu0 0.0
      %1053 = vmatprep.subr.mxu0 0.0
      %1054 = vmatpush1.msra.mxu0 0.0
      %1055 = vmatprep.subr.mxu0 0.0
      %1056 = vmatpush1.msra.mxu0 0.0
      %1057 = vmatprep.subr.mxu0 0.0
      %1058 = vmatpush1.msra.mxu0 0.0
      %1059 = vmatprep.subr.mxu0 0.0
      %1060 = vmatpush1.msra.mxu0 0.0
      %1061 = vmatprep.subr.mxu0 0.0
      %1062 = vmatpush1.msra.mxu0 0.0
      %1063 = vmatprep.subr.mxu0 0.0
      %1064 = vmatpush1.msra.mxu0 0.0
      %1065 = vmatprep.subr.mxu0 0.0
      %1066 = vmatpush1.msra.mxu0 0.0
      %1067 = vmatprep.subr.mxu0 0.0
      %1068 = vmatpush1.msra.mxu0 0.0
      %1069 = vmatprep.subr.mxu0 0.0
      %1070 = vmatpush1.msra.mxu0 0.0
      %1071 = vmatprep.subr.mxu0 0.0
      %1072 = vmatpush1.msra.mxu0 0.0
      %1073 = vmatprep.subr.mxu0 0.0
      %1074 = vmatpush1.msra.mxu0 0.0
      %1075 = vmatprep.subr.mxu0 0.0
      %1076 = vmatpush1.msra.mxu0 0.0
      %1077 = vmatprep.mubr.f32.mxu0 0.0
      %1078 = vmatmul.mubr.f32.gmra.mrb[0].mxu0 %v1007
      %v1079 = vpop.f32.mrb[0].mxu0
      %v1080 = vadd.f32 %v426, %v1079
      %v1081 = vpop.f32.mrb[0].mxu0
      %1082 = vdwg.mxu0
      %v1083 = vxor.u32 %v1080, 2147483648
      %v1084 = vmul.f32 %v1083, 1.442695
      %v1085 = vpow.pop %v1084
      %v1086 = vadd.f32 %v1085, 1.0
      %v1087 = vrcp.pop %v1086
      %v1088 = vmul.f32 1.0, %v1087
      %1090 = vset.pattern.permute.xlu0 0
      %1091 = vperm.xlu0 %1090, %v1088
      %v1092 = vpop.permute.xlu0 %1091
      %v1094 = vmul.f32 %v919, %v1092
      %v1095 = vmul.f32 %v920, %v1092
      %v1096 = vadd.f32 %v1094, %v442
      %v1097 = vadd.f32 %v1095, %v444
      %v1098 = vmax.f32 %v1096, 0.0
      %v1099 = vmax.f32 %v1097, 0.0
      %v1102 = vcombine.low %v1098, %v1099
      %1104 = vst [vmem:[%s415] sm:$0xff] %v1102
      %p1105 = scmp.lt.s32.totalorder %s25, 1
      %s1106 = scalar_select %p1105, %s25, 1
      %s1107 = smul.addr %s1106, 2
      %s1108 = smul.addr %s1107, 4
      %s1109 = scalar_lea.vmem %s12, %s1108
      // Predicated region
      $region69: #{basic_block_forward.1} parent=67 // pred_check
        %p1110 = pneg %p300
      $region70: #{basic_block_forward.1} parent=67 // pred_check_branch
        %1112 = sbr.rel (%p1110) target = $region72
      $region71: #{basic_block_forward.1} parent=67 // pred_region
        _
      $region72: #{basic_block_forward.1} parent=67 // pred_fallthru
        _
    $region68: #{basic_block_forward.1} parent=5 // pred_fallthru
      _
    %p1113 = scmp.le.s32.totalorder 2, %s20
    // Predicated region
    $region73: #{basic_block_forward.1} parent=5 // pred_check
      %p1114 = pneg %p1113
    $region74: #{basic_block_forward.1} parent=5 // pred_check_branch
      %1116 = sbr.rel (%p1114) target = $region76
    $region75: #{basic_block_forward.1} parent=5 // pred_region
      %s1117 = ssub.s32 %s20, 2
      // Predicated region
      $region77: #{basic_block_forward.1} parent=75 // pred_check
        %p1118 = pneg %p306
      $region78: #{basic_block_forward.1} parent=75 // pred_check_branch
        %1120 = sbr.rel (%p1118) target = $region80
      $region79: #{basic_block_forward.1} parent=75 // pred_region
        %p1121 = scmp.lt.s32.totalorder %s26, 1
        %s1122 = scalar_select %p1121, %s26, 1
        %s1123 = smul.addr %s1122, 2
        %s1124 = smul.addr %s1123, 4
        %s1125 = scalar_lea.vmem %s12, %s1124
      $region80: #{basic_block_forward.1} parent=75 // pred_fallthru
        _
    $region76: #{basic_block_forward.1} parent=5 // pred_fallthru
      _
  $region6: #{basic_block_forward.1} parent=0 // loop_footer
    %s24 = sadd.s32 1, %s20
  $region7: #{basic_block_forward.1} parent=0 // loop_footer_branch
    %19 = sbr.rel target = $region3
  $region8: #{basic_block_forward.1} parent=0 // loop_exit
    _

</llo_original>
